<compile_context>
chip_gen: v5e
topology: v5e:2x2
jax: 0.10.0
libtpu: 0.0.40
codegen_flags: <defaults>
</compile_context>

<pallas_src>
import functools

import jax
import jax.numpy as jnp
import numpy as np
from jax import lax
from jax.experimental import pallas as pl
from jax.experimental.pallas import tpu as pltpu


# ----------------------------- Pallas kernel --------------------------------
def _instance_loss_kernel(x_ref, t_ref, o_ref, sums_ref, counts_ref, var_ref,
                          *, K, E, num_classes, ignore_index,
                          delta_var, delta_dist, alpha, beta, gamma):
    ph = pl.program_id(1)                 # 0: cluster sums/counts, 1: variance
    pc = pl.program_id(2)                 # pixel-chunk index
    last_pc = pl.num_programs(2) - 1

    x = x_ref[0]                          # (E, TP) f32, pixels on lanes
    t = t_ref[0]                          # (1, TP) int32 labels (pad = -1)

    # Kept class ids with ignore_index skipped (static, like keep_indices).
    ids = lax.broadcasted_iota(jnp.int32, (K, 1), 0)
    if 0 <= ignore_index < num_classes:
        ids = ids + (ids >= ignore_index).astype(jnp.int32)
    onehot = (t == ids).astype(jnp.float32)                     # (K, TP)

    @pl.when(jnp.logical_and(ph == 0, pc == 0))
    def _init():
        sums_ref[...] = jnp.zeros_like(sums_ref)
        counts_ref[...] = jnp.zeros_like(counts_ref)
        var_ref[...] = jnp.zeros_like(var_ref)

    @pl.when(ph == 0)
    def _pass1():
        # per-class embedding sums: (K,E) += onehot (K,TP) . x (E,TP)^T  (MXU)
        sums_ref[...] += lax.dot_general(
            onehot, x, (((1,), (1,)), ((), ())),
            preferred_element_type=jnp.float32)
        counts_ref[...] += jnp.sum(onehot, axis=1, keepdims=True)   # (K,1)

    @pl.when(ph == 1)
    def _pass2():
        counts = jnp.maximum(counts_ref[...], 1.0)     # guard absent classes
        inv_counts = 1.0 / counts                      # hoisted single divide
        means = sums_ref[...] * inv_counts             # (K, E)
        m_sq = jnp.sum(means * means, axis=1, keepdims=True)        # (K, 1)

        # ||x_p - mean_c||^2 via expansion; x_sq is a sublane (XLU) reduce.
        x_sq = jnp.sum(x * x, axis=0, keepdims=True)                # (1, TP)
        cross = jnp.dot(means, x, preferred_element_type=jnp.float32)  # (K,TP)
        dist2 = jnp.maximum(m_sq + x_sq - 2.0 * cross, 0.0)
        hinge = jnp.maximum(jnp.sqrt(dist2) - delta_var, 0.0)
        var_ref[...] += jnp.sum(hinge * hinge * onehot, axis=1, keepdims=True)

    @pl.when(jnp.logical_and(ph == 1, pc == last_pc))
    def _finalize():
        counts = jnp.maximum(counts_ref[...], 1.0)
        inv_counts = 1.0 / counts
        means = sums_ref[...] * inv_counts                          # (K, E)
        m_sq = jnp.sum(means * means, axis=1, keepdims=True)        # (K, 1)

        inv_K = 1.0 / K
        variance_term = jnp.sum(var_ref[...] * inv_counts,
                                keepdims=True) * inv_K              # (1, 1)
        reg_term = jnp.sum(jnp.sqrt(m_sq), keepdims=True) * inv_K   # (1, 1)

        if K > 1:
            ones_row = jnp.ones((1, E), jnp.float32)
            contract_last = (((1,), (1,)), ((), ()))
            m_sq_row = lax.dot_general(ones_row, means * means, contract_last,
                                       preferred_element_type=jnp.float32)
            mm = lax.dot_general(means, means, contract_last,
                                 preferred_element_type=jnp.float32)  # (K, K)
            d2 = jnp.maximum(m_sq + m_sq_row - 2.0 * mm, 0.0)
            dkk = jnp.sqrt(d2)
            r = lax.broadcasted_iota(jnp.int32, (K, K), 0)
            c = lax.broadcasted_iota(jnp.int32, (K, K), 1)
            eye = (r == c).astype(jnp.float32)
            repulsion = 2.0 * delta_dist * (1.0 - eye)
            hd = jnp.maximum(repulsion - dkk, 0.0)
            distance_term = jnp.sum(hd * hd, keepdims=True) * (1.0 / (K * (K - 1)))
        else:
            distance_term = jnp.zeros((1, 1), jnp.float32)

        loss = alpha * variance_term + beta * distance_term + gamma * reg_term
        o_ref[0] = loss.astype(jnp.float32)


# ------------------------------- wrapper -------------------------------------
def instance_loss(embeddings, target, *, num_classes, ignore_index,
                  delta_var=0.5, delta_dist=1.5, alpha=1.0, beta=1.0,
                  gamma=0.001, max_pixel_chunk=2048):
    """embeddings: (N, E, H, W) f32 ; target: (N, H, W) int labels."""
    N, E, H, W = embeddings.shape
    P = H * W
    keep = [c for c in range(num_classes) if c != ignore_index]
    K = len(keep)
    assert K >= 1

    # No host-side transpose: reshape only (free), pixels end up on lanes.
    x = embeddings.reshape(N, E, P).astype(jnp.float32)
    # NOTE: the size-1 middle dim of t pads the label tile to 8 sublanes; tiny.
    t = target.reshape(N, 1, P).astype(jnp.int32)

    # Pixel-chunk size: multiple of 128 lanes, capped so double-buffered
    # (1, E, TP) blocks stay well under scoped VMEM on all generations.
    LANE = 128
    TP = min(max_pixel_chunk, pl.cdiv(P, LANE) * LANE)
    P_pad = pl.cdiv(P, TP) * TP
    if P_pad != P:
        x = jnp.pad(x, ((0, 0), (0, 0), (0, P_pad - P)))
        t = jnp.pad(t, ((0, 0), (0, 0), (0, P_pad - P)), constant_values=-1)
    PC = P_pad // TP

    kernel = functools.partial(
        _instance_loss_kernel, K=K, E=E, num_classes=num_classes,
        ignore_index=ignore_index, delta_var=delta_var, delta_dist=delta_dist,
        alpha=alpha, beta=beta, gamma=gamma)

    per_batch = pl.pallas_call(
        kernel,
        out_shape=jax.ShapeDtypeStruct((N, 1, 1), jnp.float32),
        grid_spec=pltpu.PrefetchScalarGridSpec(
            num_scalar_prefetch=0,
            grid=(N, 2, PC),
            in_specs=[pl.BlockSpec((1, E, TP), lambda n, ph, pc: (n, 0, pc)),
                      pl.BlockSpec((1, 1, TP), lambda n, ph, pc: (n, 0, pc))],
            out_specs=pl.BlockSpec((1, 1, 1), lambda n, ph, pc: (n, 0, 0)),
            scratch_shapes=[pltpu.VMEM((K, E), jnp.float32),   # cluster sums
                            pltpu.VMEM((K, 1), jnp.float32),   # voxel counts
                            pltpu.VMEM((K, 1), jnp.float32)]), # variance acc
        compiler_params=pltpu.CompilerParams(
            dimension_semantics=("parallel", "arbitrary", "arbitrary")),
    )(x, t)

    return (jnp.sum(per_batch) / N).reshape(1)


# --------------------- pure-JAX reference (mirrors torch) --------------------
def reference_loss(emb, tgt, *, num_classes, ignore_index, delta_var,
                   delta_dist, alpha, beta, gamma):
    N, E, H, W = emb.shape
    keep = jnp.array([c for c in range(num_classes) if c != ignore_index])
    K = keep.shape[0]
    total = 0.0
    for i in range(N):
        x = emb[i].reshape(E, -1).astype(jnp.float32)               # (E, P)
        lab = tgt[i].reshape(-1)                                    # (P,)
        onehot = (lab[None, :] == keep[:, None]).astype(jnp.float32)  # (K, P)
        counts = onehot.sum(1)                                      # (K,)
        means = (onehot @ x.T) / counts[:, None]                    # (K, E)
        diff = x.T[None, :, :] - means[:, None, :]                  # (K, P, E)
        norms = jnp.sqrt(jnp.sum(diff * diff, axis=2)) * onehot     # (K, P)
        var = jnp.sum(jnp.maximum(norms - delta_var, 0.0) ** 2, axis=1) / counts
        variance_term = jnp.sum(var) / K
        if K > 1:
            dm = jnp.sqrt(jnp.sum((means[:, None, :] - means[None, :, :]) ** 2,
                                  axis=2))
            rep = 2.0 * delta_dist * (1.0 - jnp.eye(K))
            distance_term = jnp.sum(jnp.maximum(rep - dm, 0.0) ** 2) / (K * (K - 1))
        else:
            distance_term = 0.0
        reg = jnp.sum(jnp.sqrt(jnp.sum(means ** 2, axis=1))) / K
        total = total + alpha * variance_term + beta * distance_term + gamma * reg
    return jnp.asarray([total / N], dtype=jnp.float32)


# --------------------------------- main --------------------------------------
if __name__ == "__main__":
    # deterministic config (loss_config surrogate)
    NUM_CLASSES = 4
    IGNORE_INDEX = 0
    DELTA_VAR, DELTA_DIST = 0.5, 1.5
    ALPHA, BETA, GAMMA = 1.0, 1.0, 0.001

    N, E, H, W = 2, 32, 16, 16
    key = jax.random.PRNGKey(0)
    k1, k2 = jax.random.split(key)
    emb = jax.random.normal(k1, (N, E, H, W), dtype=jnp.float32)
    tgt = jax.random.randint(k2, (N, H, W), 0, NUM_CLASSES, dtype=jnp.int32)
    # guarantee every label 0..C-1 is present in every sample (so C = max+1)
    tgt = tgt.at[:, 0, :NUM_CLASSES].set(jnp.arange(NUM_CLASSES, dtype=jnp.int32))

    out = instance_loss(emb, tgt,
                        num_classes=NUM_CLASSES, ignore_index=IGNORE_INDEX,
                        delta_var=DELTA_VAR, delta_dist=DELTA_DIST,
                        alpha=ALPHA, beta=BETA, gamma=GAMMA)
    out = jax.block_until_ready(out)

    ref = reference_loss(emb, tgt,
                         num_classes=NUM_CLASSES, ignore_index=IGNORE_INDEX,
                         delta_var=DELTA_VAR, delta_dist=DELTA_DIST,
                         alpha=ALPHA, beta=BETA, gamma=GAMMA)
    np.testing.assert_allclose(np.asarray(out), np.asarray(ref),
                               rtol=2e-3, atol=1e-4)
    print("KERNEL_OK")
</pallas_src>

<mosaic_0001>
module attributes {stable_mosaic.version = 11 : i64} {
  func.func @_instance_loss_kernel(%arg0: i32, %arg1: i32, %arg2: i32, %arg3: memref<1x32x256xf32, #tpu.memory_space<vmem>>, %arg4: memref<1x1x256xi32, #tpu.memory_space<vmem>>, %arg5: memref<1x1x1xf32, #tpu.memory_space<vmem>>, %arg6: memref<3x32xf32, #tpu.memory_space<vmem>>, %arg7: memref<3x1xf32, #tpu.memory_space<vmem>>, %arg8: memref<3x1xf32, #tpu.memory_space<vmem>>) attributes {dimension_semantics = [#tpu.dimension_semantics<parallel>, #tpu.dimension_semantics<arbitrary>, #tpu.dimension_semantics<arbitrary>], iteration_bounds = array<i64: 2, 2, 1>, scalar_prefetch = 0 : i64, scratch_operands = 3 : i64, tpu.core_type = #tpu.core_type<tc>, window_params = [{transform_indices = @transform_0, window_bounds = array<i64: 1, 32, 256>}, {transform_indices = @transform_1, window_bounds = array<i64: 1, 1, 256>}, {transform_indices = @transform_2, window_bounds = array<i64: 1, 1, 1>}]} {
    %c0 = arith.constant 0 : index
    %c0_0 = arith.constant 0 : index
    %c0_1 = arith.constant 0 : index
    %0 = vector.load %arg3[%c0, %c0_0, %c0_1] : memref<1x32x256xf32, #tpu.memory_space<vmem>>, vector<1x32x256xf32>
    %1 = vector.shape_cast %0 : vector<1x32x256xf32> to vector<32x256xf32>
    %c0_2 = arith.constant 0 : index
    %c0_3 = arith.constant 0 : index
    %c0_4 = arith.constant 0 : index
    %2 = vector.load %arg4[%c0_2, %c0_3, %c0_4] : memref<1x1x256xi32, #tpu.memory_space<vmem>>, vector<1x1x256xi32>
    %3 = vector.shape_cast %2 : vector<1x1x256xi32> to vector<1x256xi32>
    %4 = tpu.iota {dimensions = array<i32: 0>} : vector<3x1xi32>
    %c0_i32 = arith.constant 0 : i32
    %5 = vector.broadcast %c0_i32 : i32 to vector<3x1xi32>
    %6 = arith.cmpi sge, %4, %5 : vector<3x1xi32>
    %7 = arith.extui %6 : vector<3x1xi1> to vector<3x1xi32>
    %8 = arith.addi %4, %7 : vector<3x1xi32>
    %9 = vector.broadcast %3 : vector<1x256xi32> to vector<3x256xi32>
    %10 = vector.broadcast %8 : vector<3x1xi32> to vector<3x256xi32>
    %11 = arith.cmpi eq, %9, %10 : vector<3x256xi32>
    %12 = arith.extui %11 : vector<3x256xi1> to vector<3x256xi32>
    %13 = arith.sitofp %12 : vector<3x256xi32> to vector<3x256xf32>
    %c0_i32_5 = arith.constant 0 : i32
    %14 = arith.cmpi eq, %arg1, %c0_i32_5 : i32
    %c0_i32_6 = arith.constant 0 : i32
    %15 = arith.cmpi eq, %arg2, %c0_i32_6 : i32
    %16 = arith.andi %14, %15 : i1
    %17 = arith.extui %16 : i1 to i32
    %c0_i32_7 = arith.constant 0 : i32
    %18 = arith.cmpi ne, %17, %c0_i32_7 : i32
    scf.if %18 {
      %cst = arith.constant 0.000000e+00 : f32
      %30 = vector.broadcast %cst : f32 to vector<3x32xf32>
      %c0_14 = arith.constant 0 : index
      %c0_15 = arith.constant 0 : index
      %31 = vector.load %arg6[%c0_14, %c0_15] : memref<3x32xf32, #tpu.memory_space<vmem>>, vector<3x32xf32>
      tpu.vector_store %arg6[%c0_14, %c0_15], %30 {strides = array<i32>} : memref<3x32xf32, #tpu.memory_space<vmem>>, vector<3x32xf32>,
      %cst_16 = arith.constant 0.000000e+00 : f32
      %32 = vector.broadcast %cst_16 : f32 to vector<3x1xf32>
      %c0_17 = arith.constant 0 : index
      %c0_18 = arith.constant 0 : index
      %33 = vector.load %arg7[%c0_17, %c0_18] : memref<3x1xf32, #tpu.memory_space<vmem>>, vector<3x1xf32>
      tpu.vector_store %arg7[%c0_17, %c0_18], %32 {strides = array<i32>} : memref<3x1xf32, #tpu.memory_space<vmem>>, vector<3x1xf32>,
      %cst_19 = arith.constant 0.000000e+00 : f32
      %34 = vector.broadcast %cst_19 : f32 to vector<3x1xf32>
      %c0_20 = arith.constant 0 : index
      %c0_21 = arith.constant 0 : index
      %35 = vector.load %arg8[%c0_20, %c0_21] : memref<3x1xf32, #tpu.memory_space<vmem>>, vector<3x1xf32>
      tpu.vector_store %arg8[%c0_20, %c0_21], %34 {strides = array<i32>} : memref<3x1xf32, #tpu.memory_space<vmem>>, vector<3x1xf32>,
    } else {
    }
    %c0_i32_8 = arith.constant 0 : i32
    %19 = arith.cmpi eq, %arg1, %c0_i32_8 : i32
    %20 = arith.extui %19 : i1 to i32
    %c0_i32_9 = arith.constant 0 : i32
    %21 = arith.cmpi ne, %20, %c0_i32_9 : i32
    scf.if %21 {
      %c0_14 = arith.constant 0 : index
      %c0_15 = arith.constant 0 : index
      %30 = vector.load %arg6[%c0_14, %c0_15] : memref<3x32xf32, #tpu.memory_space<vmem>>, vector<3x32xf32>
      %cst = arith.constant dense<0.000000e+00> : vector<3x32xf32>
      %31 = tpu.matmul %13, %1, %cst {dimension_numbers = #tpu.dot_dimension_numbers<[1], [1], [0], [0], [0, 0, 1, 0], [], []>} : vector<3x256xf32>, vector<32x256xf32>, vector<3x32xf32> -> vector<3x32xf32>
      %32 = arith.addf %30, %31 : vector<3x32xf32>
      %c0_16 = arith.constant 0 : index
      %c0_17 = arith.constant 0 : index
      %33 = vector.load %arg6[%c0_16, %c0_17] : memref<3x32xf32, #tpu.memory_space<vmem>>, vector<3x32xf32>
      tpu.vector_store %arg6[%c0_16, %c0_17], %32 {strides = array<i32>} : memref<3x32xf32, #tpu.memory_space<vmem>>, vector<3x32xf32>,
      %c0_18 = arith.constant 0 : index
      %c0_19 = arith.constant 0 : index
      %34 = vector.load %arg7[%c0_18, %c0_19] : memref<3x1xf32, #tpu.memory_space<vmem>>, vector<3x1xf32>
      %cst_20 = arith.constant dense<0.000000e+00> : vector<3xf32>
      %35 = vector.multi_reduction <add>, %13, %cst_20 [1] : vector<3x256xf32> to vector<3xf32>
      %36 = vector.shape_cast %35 : vector<3xf32> to vector<3x1xf32>
      %37 = arith.addf %34, %36 : vector<3x1xf32>
      %c0_21 = arith.constant 0 : index
      %c0_22 = arith.constant 0 : index
      %38 = vector.load %arg7[%c0_21, %c0_22] : memref<3x1xf32, #tpu.memory_space<vmem>>, vector<3x1xf32>
      tpu.vector_store %arg7[%c0_21, %c0_22], %37 {strides = array<i32>} : memref<3x1xf32, #tpu.memory_space<vmem>>, vector<3x1xf32>,
    } else {
    }
    %c1_i32 = arith.constant 1 : i32
    %22 = arith.cmpi eq, %arg1, %c1_i32 : i32
    %23 = arith.extui %22 : i1 to i32
    %c0_i32_10 = arith.constant 0 : i32
    %24 = arith.cmpi ne, %23, %c0_i32_10 : i32
    scf.if %24 {
      %c0_14 = arith.constant 0 : index
      %c0_15 = arith.constant 0 : index
      %30 = vector.load %arg7[%c0_14, %c0_15] : memref<3x1xf32, #tpu.memory_space<vmem>>, vector<3x1xf32>
      %cst = arith.constant 1.000000e+00 : f32
      %31 = vector.broadcast %cst : f32 to vector<3x1xf32>
      %32 = arith.maximumf %30, %31 : vector<3x1xf32>
      %cst_16 = arith.constant 1.000000e+00 : f32
      %33 = vector.broadcast %cst_16 : f32 to vector<3x1xf32>
      %34 = arith.divf %33, %32 : vector<3x1xf32>
      %c0_17 = arith.constant 0 : index
      %c0_18 = arith.constant 0 : index
      %35 = vector.load %arg6[%c0_17, %c0_18] : memref<3x32xf32, #tpu.memory_space<vmem>>, vector<3x32xf32>
      %36 = vector.broadcast %34 : vector<3x1xf32> to vector<3x32xf32>
      %37 = arith.mulf %35, %36 : vector<3x32xf32>
      %38 = arith.mulf %37, %37 : vector<3x32xf32>
      %cst_19 = arith.constant dense<0.000000e+00> : vector<3xf32>
      %39 = vector.multi_reduction <add>, %38, %cst_19 [1] : vector<3x32xf32> to vector<3xf32>
      %40 = vector.shape_cast %39 : vector<3xf32> to vector<3x1xf32>
      %41 = arith.mulf %1, %1 : vector<32x256xf32>
      %cst_20 = arith.constant dense<0.000000e+00> : vector<256xf32>
      %42 = vector.multi_reduction <add>, %41, %cst_20 [0] : vector<32x256xf32> to vector<256xf32>
      %43 = vector.shape_cast %42 : vector<256xf32> to vector<1x256xf32>
      %cst_21 = arith.constant dense<0.000000e+00> : vector<3x256xf32>
      %44 = tpu.matmul %37, %1, %cst_21 {dimension_numbers = #tpu.dot_dimension_numbers<[1], [0], [0], [1], [0, 0, 1, 1], [], []>} : vector<3x32xf32>, vector<32x256xf32>, vector<3x256xf32> -> vector<3x256xf32>
      %45 = vector.broadcast %40 : vector<3x1xf32> to vector<3x256xf32>
      %46 = vector.broadcast %43 : vector<1x256xf32> to vector<3x256xf32>
      %47 = arith.addf %45, %46 : vector<3x256xf32>
      %cst_22 = arith.constant 2.000000e+00 : f32
      %48 = vector.broadcast %cst_22 : f32 to vector<3x256xf32>
      %49 = arith.mulf %48, %44 : vector<3x256xf32>
      %50 = arith.subf %47, %49 : vector<3x256xf32>
      %cst_23 = arith.constant 0.000000e+00 : f32
      %51 = vector.broadcast %cst_23 : f32 to vector<3x256xf32>
      %52 = arith.maximumf %50, %51 : vector<3x256xf32>
      %53 = math.sqrt %52 : vector<3x256xf32>
      %cst_24 = arith.constant 5.000000e-01 : f32
      %54 = vector.broadcast %cst_24 : f32 to vector<3x256xf32>
      %55 = arith.subf %53, %54 : vector<3x256xf32>
      %cst_25 = arith.constant 0.000000e+00 : f32
      %56 = vector.broadcast %cst_25 : f32 to vector<3x256xf32>
      %57 = arith.maximumf %55, %56 : vector<3x256xf32>
      %c0_26 = arith.constant 0 : index
      %c0_27 = arith.constant 0 : index
      %58 = vector.load %arg8[%c0_26, %c0_27] : memref<3x1xf32, #tpu.memory_space<vmem>>, vector<3x1xf32>
      %59 = arith.mulf %57, %57 : vector<3x256xf32>
      %60 = arith.mulf %59, %13 : vector<3x256xf32>
      %cst_28 = arith.constant dense<0.000000e+00> : vector<3xf32>
      %61 = vector.multi_reduction <add>, %60, %cst_28 [1] : vector<3x256xf32> to vector<3xf32>
      %62 = vector.shape_cast %61 : vector<3xf32> to vector<3x1xf32>
      %63 = arith.addf %58, %62 : vector<3x1xf32>
      %c0_29 = arith.constant 0 : index
      %c0_30 = arith.constant 0 : index
      %64 = vector.load %arg8[%c0_29, %c0_30] : memref<3x1xf32, #tpu.memory_space<vmem>>, vector<3x1xf32>
      tpu.vector_store %arg8[%c0_29, %c0_30], %63 {strides = array<i32>} : memref<3x1xf32, #tpu.memory_space<vmem>>, vector<3x1xf32>,
    } else {
    }
    %c1_i32_11 = arith.constant 1 : i32
    %25 = arith.cmpi eq, %arg1, %c1_i32_11 : i32
    %c0_i32_12 = arith.constant 0 : i32
    %26 = arith.cmpi eq, %arg2, %c0_i32_12 : i32
    %27 = arith.andi %25, %26 : i1
    %28 = arith.extui %27 : i1 to i32
    %c0_i32_13 = arith.constant 0 : i32
    %29 = arith.cmpi ne, %28, %c0_i32_13 : i32
    scf.if %29 {
      %c0_14 = arith.constant 0 : index
      %c0_15 = arith.constant 0 : index
      %30 = vector.load %arg7[%c0_14, %c0_15] : memref<3x1xf32, #tpu.memory_space<vmem>>, vector<3x1xf32>
      %cst = arith.constant 1.000000e+00 : f32
      %31 = vector.broadcast %cst : f32 to vector<3x1xf32>
      %32 = arith.maximumf %30, %31 : vector<3x1xf32>
      %cst_16 = arith.constant 1.000000e+00 : f32
      %33 = vector.broadcast %cst_16 : f32 to vector<3x1xf32>
      %34 = arith.divf %33, %32 : vector<3x1xf32>
      %c0_17 = arith.constant 0 : index
      %c0_18 = arith.constant 0 : index
      %35 = vector.load %arg6[%c0_17, %c0_18] : memref<3x32xf32, #tpu.memory_space<vmem>>, vector<3x32xf32>
      %36 = vector.broadcast %34 : vector<3x1xf32> to vector<3x32xf32>
      %37 = arith.mulf %35, %36 : vector<3x32xf32>
      %38 = arith.mulf %37, %37 : vector<3x32xf32>
      %cst_19 = arith.constant dense<0.000000e+00> : vector<3xf32>
      %39 = vector.multi_reduction <add>, %38, %cst_19 [1] : vector<3x32xf32> to vector<3xf32>
      %40 = vector.shape_cast %39 : vector<3xf32> to vector<3x1xf32>
      %c0_20 = arith.constant 0 : index
      %c0_21 = arith.constant 0 : index
      %41 = vector.load %arg8[%c0_20, %c0_21] : memref<3x1xf32, #tpu.memory_space<vmem>>, vector<3x1xf32>
      %42 = arith.mulf %41, %34 : vector<3x1xf32>
      %43 = vector.shape_cast %42 : vector<3x1xf32> to vector<1x3x1xf32>
      %cst_22 = arith.constant dense<0.000000e+00> : vector<1xf32>
      %44 = vector.multi_reduction <add>, %43, %cst_22 [1, 2] : vector<1x3x1xf32> to vector<1xf32>
      %45 = vector.shape_cast %44 : vector<1xf32> to vector<1x1x1xf32>
      %46 = vector.extract %45[0, 0, 0] : f32 from vector<1x1x1xf32>
      %47 = vector.broadcast %46 : f32 to vector<1x1xf32>
      %cst_23 = arith.constant 0.333333343 : f32
      %48 = vector.broadcast %cst_23 : f32 to vector<1x1xf32>
      %49 = arith.mulf %47, %48 : vector<1x1xf32>
      %50 = math.sqrt %40 : vector<3x1xf32>
      %51 = vector.shape_cast %50 : vector<3x1xf32> to vector<1x3x1xf32>
      %cst_24 = arith.constant dense<0.000000e+00> : vector<1xf32>
      %52 = vector.multi_reduction <add>, %51, %cst_24 [1, 2] : vector<1x3x1xf32> to vector<1xf32>
      %53 = vector.shape_cast %52 : vector<1xf32> to vector<1x1x1xf32>
      %54 = vector.extract %53[0, 0, 0] : f32 from vector<1x1x1xf32>
      %55 = vector.broadcast %54 : f32 to vector<1x1xf32>
      %cst_25 = arith.constant 0.333333343 : f32
      %56 = vector.broadcast %cst_25 : f32 to vector<1x1xf32>
      %57 = arith.mulf %55, %56 : vector<1x1xf32>
      %cst_26 = arith.constant 1.000000e+00 : f32
      %58 = vector.broadcast %cst_26 : f32 to vector<1x32xf32>
      %59 = arith.mulf %37, %37 : vector<3x32xf32>
      %cst_27 = arith.constant dense<0.000000e+00> : vector<1x3xf32>
      %60 = tpu.matmul %58, %59, %cst_27 {dimension_numbers = #tpu.dot_dimension_numbers<[1], [1], [0], [0], [0, 0, 1, 0], [], []>} : vector<1x32xf32>, vector<3x32xf32>, vector<1x3xf32> -> vector<1x3xf32>
      %cst_28 = arith.constant dense<0.000000e+00> : vector<3x3xf32>
      %61 = tpu.matmul %37, %37, %cst_28 {dimension_numbers = #tpu.dot_dimension_numbers<[1], [1], [0], [0], [0, 0, 1, 0], [], []>} : vector<3x32xf32>, vector<3x32xf32>, vector<3x3xf32> -> vector<3x3xf32>
      %62 = vector.broadcast %40 : vector<3x1xf32> to vector<3x3xf32>
      %63 = vector.broadcast %60 : vector<1x3xf32> to vector<3x3xf32>
      %64 = arith.addf %62, %63 : vector<3x3xf32>
      %cst_29 = arith.constant 2.000000e+00 : f32
      %65 = vector.broadcast %cst_29 : f32 to vector<3x3xf32>
      %66 = arith.mulf %65, %61 : vector<3x3xf32>
      %67 = arith.subf %64, %66 : vector<3x3xf32>
      %cst_30 = arith.constant 0.000000e+00 : f32
      %68 = vector.broadcast %cst_30 : f32 to vector<3x3xf32>
      %69 = arith.maximumf %67, %68 : vector<3x3xf32>
      %70 = math.sqrt %69 : vector<3x3xf32>
      %71 = tpu.iota {dimensions = array<i32: 0>} : vector<3x3xi32>
      %72 = tpu.iota {dimensions = array<i32: 1>} : vector<3x3xi32>
      %73 = arith.cmpi eq, %71, %72 : vector<3x3xi32>
      %74 = arith.extui %73 : vector<3x3xi1> to vector<3x3xi32>
      %75 = arith.sitofp %74 : vector<3x3xi32> to vector<3x3xf32>
      %cst_31 = arith.constant 1.000000e+00 : f32
      %76 = vector.broadcast %cst_31 : f32 to vector<3x3xf32>
      %77 = arith.subf %76, %75 : vector<3x3xf32>
      %cst_32 = arith.constant 3.000000e+00 : f32
      %78 = vector.broadcast %cst_32 : f32 to vector<3x3xf32>
      %79 = arith.mulf %78, %77 : vector<3x3xf32>
      %80 = arith.subf %79, %70 : vector<3x3xf32>
      %cst_33 = arith.constant 0.000000e+00 : f32
      %81 = vector.broadcast %cst_33 : f32 to vector<3x3xf32>
      %82 = arith.maximumf %80, %81 : vector<3x3xf32>
      %83 = arith.mulf %82, %82 : vector<3x3xf32>
      %84 = vector.shape_cast %83 : vector<3x3xf32> to vector<1x3x3xf32>
      %cst_34 = arith.constant dense<0.000000e+00> : vector<1xf32>
      %85 = vector.multi_reduction <add>, %84, %cst_34 [1, 2] : vector<1x3x3xf32> to vector<1xf32>
      %86 = vector.shape_cast %85 : vector<1xf32> to vector<1x1x1xf32>
      %87 = vector.extract %86[0, 0, 0] : f32 from vector<1x1x1xf32>
      %88 = vector.broadcast %87 : f32 to vector<1x1xf32>
      %cst_35 = arith.constant 0.166666672 : f32
      %89 = vector.broadcast %cst_35 : f32 to vector<1x1xf32>
      %90 = arith.mulf %88, %89 : vector<1x1xf32>
      %cst_36 = arith.constant 1.000000e+00 : f32
      %91 = vector.broadcast %cst_36 : f32 to vector<1x1xf32>
      %92 = arith.mulf %91, %49 : vector<1x1xf32>
      %cst_37 = arith.constant 1.000000e+00 : f32
      %93 = vector.broadcast %cst_37 : f32 to vector<1x1xf32>
      %94 = arith.mulf %93, %90 : vector<1x1xf32>
      %95 = arith.addf %92, %94 : vector<1x1xf32>
      %cst_38 = arith.constant 1.000000e-03 : f32
      %96 = vector.broadcast %cst_38 : f32 to vector<1x1xf32>
      %97 = arith.mulf %96, %57 : vector<1x1xf32>
      %98 = arith.addf %95, %97 : vector<1x1xf32>
      %c0_39 = arith.constant 0 : index
      %c0_40 = arith.constant 0 : index
      %c0_41 = arith.constant 0 : index
      %99 = vector.load %arg5[%c0_39, %c0_40, %c0_41] : memref<1x1x1xf32, #tpu.memory_space<vmem>>, vector<1x1x1xf32>
      %100 = vector.shape_cast %99 : vector<1x1x1xf32> to vector<1x1xf32>
      %101 = vector.shape_cast %98 : vector<1x1xf32> to vector<1x1x1xf32>
      tpu.vector_store %arg5[%c0_39, %c0_40, %c0_41], %101 {strides = array<i32>} : memref<1x1x1xf32, #tpu.memory_space<vmem>>, vector<1x1x1xf32>,
    } else {
    }
    return
  }
  func.func @transform_0(%arg0: i32, %arg1: i32, %arg2: i32) -> (i32, i32, i32) {
    %c0_i32 = arith.constant 0 : i32
    %c0_i32_0 = arith.constant 0 : i32
    return %arg0, %c0_i32, %arg2 : i32, i32, i32
  }
  func.func @transform_1(%arg0: i32, %arg1: i32, %arg2: i32) -> (i32, i32, i32) {
    %c0_i32 = arith.constant 0 : i32
    %c0_i32_0 = arith.constant 0 : i32
    return %arg0, %c0_i32, %arg2 : i32, i32, i32
  }
  func.func @transform_2(%arg0: i32, %arg1: i32, %arg2: i32) -> (i32, i32, i32) {
    %c0_i32 = arith.constant 0 : i32
    %c0_i32_0 = arith.constant 0 : i32
    %c0_i32_1 = arith.constant 0 : i32
    return %arg0, %c0_i32, %c0_i32_0 : i32, i32, i32
  }
}

</mosaic_0001>

<llo_original>
// kernel: tpu_custom_call.1
$region0: #{tpu_custom_call.1}
  #allocation0 [shape = 'u32[]', space=smem, size = 0x4, offset = 0x4, fixed_abs, tag = 'smem constant byte address 0x4 - core index']
  #allocation1 [shape = 'u32[72,128]{1,0:T(1,128)}', space=vmem, size = 0x9000, scoped, tag = 'internal scratch']
  #allocation2 [shape = 'f32[3,32]{1,0:T(4,128)}', space=vmem, size = 0x800, scoped, tag = 'scratch operand']
  #allocation3 [shape = 'f32[3,1]{1,0:T(4,128)}', space=vmem, size = 0x800, scoped, tag = 'scratch operand']
  #allocation4 [shape = 'f32[3,1]{1,0:T(4,128)}', space=vmem, size = 0x800, scoped, tag = 'scratch operand']
  %s0 = inlined_call_operand.hbm [shape: f32[2,32,256], index: 0, kind: input, shape index: {}]
  %s1 = inlined_call_operand.hbm [shape: s32[2,1,256], index: 1, kind: input, shape index: {}]
  %s2 = inlined_call_operand.vmem [shape: f32[2,1,1], index: 2, kind: output, shape index: {}]
  %s3 = sld [smem:[#allocation0]]
  $region65: #{tpu_custom_call.1} parent=0
    _
  %s5 = ssub.s32 1, %s3
  %s6 = scalar_select 0, %s5, %s3
  $region1: #{tpu_custom_call.1} parent=0
    #allocation5 [shape = 'u8[65536]{0}', space=vmem, size = 0x10000, scoped, tag = 'input window, operand 0']
    #allocation6 [shape = 's32[2]{0}', space=sflag, size = 0x8, scoped, tag = 'scoped memory for tpu_custom_call.1']
    #allocation7 [shape = 'u8[2048]{0}', space=vmem, size = 0x800, scoped, tag = 'input window, operand 1']
    #allocation8 [shape = 's32[2]{0}', space=sflag, size = 0x8, scoped, tag = 'scoped memory for tpu_custom_call.1']
    %7 = vsyncpa [#allocation6], 0
    %s8 = scalar_lea.sflag [#allocation6], 1
    %9 = vsyncpa %s8, 0
    %10 = vsyncpa [#allocation8], 0
    %s11 = scalar_lea.sflag [#allocation8], 1
    %12 = vsyncpa %s11, 0
    loop: start=0, step=1, limit=6
    $region2: #{tpu_custom_call.1} parent=1 // loop_pre_header
      _
    $region3: #{tpu_custom_call.1} parent=1 // loop_header
      %s14 = sphi 0, %s18
      %p15 = scmp.ge.s32.totalorder %s14, 6
      %s21 = sphi 0, %s40
      %s22 = sphi 0, %s36
      %s23 = sphi 0, %s32
      %s24 = sphi 0, %s21
      %s25 = sphi 0, %s22
      %s26 = sphi 0, %s23
      %s27 = sphi 0, %s24
      %s28 = sphi 0, %s25
      %s29 = sphi 0, %s26
      %s45 = sphi 0, %s47
      %s48 = sphi 0, %s45
      %s49 = sphi 0, %s48
      %s65 = sphi 0, %s49
      %s73 = sphi 0, %s75
      %s76 = sphi 0, %s73
      %s77 = sphi 0, %s76
      %s93 = sphi 0, %s77
      %s99 = sphi 0, %s101
      %s102 = sphi 0, %s99
      %s103 = sphi 0, %s102
      %s119 = sphi 0, %s103
    $region4: #{tpu_custom_call.1} parent=1 // loop_header_branch
      %17 = sbr.rel (%p15) target = $region8
    $region5: #{tpu_custom_call.1} parent=1 // loop_body
      %s19 = ssub.s32 %s14, 1
      %s20 = ssub.s32 %s14, 2
      %s30 = sadd.s32 1, %s23
      %p31 = scmp.ge.s32.totalorder %s30, 1
      %s32 = scalar_select %p31, 0, %s30
      %s33 = sadd.s32 1, %s22
      %s34 = scalar_select %p31, %s33, %s22
      %p35 = scmp.ge.s32.totalorder %s34, 2
      %s36 = scalar_select %p35, 0, %s34
      %s37 = sadd.s32 1, %s21
      %s38 = scalar_select %p35, %s37, %s21
      %p39 = scmp.ge.s32.totalorder %s38, 2
      %s40 = scalar_select %p39, 0, %s38
      %s41 = ssub.s32 %s21, %s40
      %s42 = ssub.s32 %s23, %s32
      %s43 = sor.u32 %s41, %s42
      %p44 = scmp.eq.s32.totalorder %s43, 0
      %s46 = sadd.s32 %s45, 1
      %s47 = scalar_select %p44, %s45, %s46
      %p50 = pneg %p44
      %p51 = scmp.eq.s32.totalorder %s14, 3
      %p52 = por %p50, %p51
      %p53 = scmp.ne.s32.totalorder %s45, %s48
      %p54 = scmp.eq.s32.totalorder %s14, 0
      %p55 = por %p53, %p54
      %p56 = scmp.ne.s32.totalorder %s45, %s48
      %p57 = scmp.eq.s32.totalorder %s19, 3
      %p58 = por %p56, %p57
      %p59 = scmp.ne.s32.totalorder %s48, %s49
      %p60 = scmp.eq.s32.totalorder %s19, 0
      %p61 = por %p59, %p60
      %p62 = scmp.ne.s32.totalorder %s48, %s49
      %p63 = scmp.eq.s32.totalorder %s20, 3
      %p64 = por %p62, %p63
      %p66 = scmp.ne.s32.totalorder %s49, %s65
      %p67 = scmp.eq.s32.totalorder %s20, 0
      %p68 = por %p66, %p67
      %s69 = ssub.s32 %s21, %s40
      %s70 = ssub.s32 %s23, %s32
      %s71 = sor.u32 %s69, %s70
      %p72 = scmp.eq.s32.totalorder %s71, 0
      %s74 = sadd.s32 %s73, 1
      %s75 = scalar_select %p72, %s73, %s74
      %p78 = pneg %p72
      %p79 = scmp.eq.s32.totalorder %s14, 3
      %p80 = por %p78, %p79
      %p81 = scmp.ne.s32.totalorder %s73, %s76
      %p82 = scmp.eq.s32.totalorder %s14, 0
      %p83 = por %p81, %p82
      %p84 = scmp.ne.s32.totalorder %s73, %s76
      %p85 = scmp.eq.s32.totalorder %s19, 3
      %p86 = por %p84, %p85
      %p87 = scmp.ne.s32.totalorder %s76, %s77
      %p88 = scmp.eq.s32.totalorder %s19, 0
      %p89 = por %p87, %p88
      %p90 = scmp.ne.s32.totalorder %s76, %s77
      %p91 = scmp.eq.s32.totalorder %s20, 3
      %p92 = por %p90, %p91
      %p94 = scmp.ne.s32.totalorder %s77, %s93
      %p95 = scmp.eq.s32.totalorder %s20, 0
      %p96 = por %p94, %p95
      %s97 = ssub.s32 %s21, %s40
      %p98 = scmp.eq.s32.totalorder %s97, 0
      %s100 = sadd.s32 %s99, 1
      %s101 = scalar_select %p98, %s99, %s100
      %p104 = pneg %p98
      %p105 = scmp.eq.s32.totalorder %s14, 3
      %p106 = por %p104, %p105
      %p107 = scmp.ne.s32.totalorder %s99, %s102
      %p108 = scmp.eq.s32.totalorder %s14, 0
      %p109 = por %p107, %p108
      %p110 = scmp.ne.s32.totalorder %s99, %s102
      %p111 = scmp.eq.s32.totalorder %s19, 3
      %p112 = por %p110, %p111
      %p113 = scmp.ne.s32.totalorder %s102, %s103
      %p114 = scmp.eq.s32.totalorder %s19, 0
      %p115 = por %p113, %p114
      %p116 = scmp.ne.s32.totalorder %s102, %s103
      %p117 = scmp.eq.s32.totalorder %s20, 3
      %p118 = por %p116, %p117
      %p120 = scmp.ne.s32.totalorder %s103, %s119
      %p121 = scmp.eq.s32.totalorder %s20, 0
      %p122 = por %p120, %p121
      %p123 = scmp.le.s32.totalorder 1, %s14
      %p124 = scmp.lt.s32.totalorder %s14, 5
      %p125 = pnand %p123, %p124
      %p126 = pneg %p125
      // Predicated region
      $region9: #{tpu_custom_call.1} parent=5 // pred_check
        _
      $region10: #{tpu_custom_call.1} parent=5 // pred_check_branch
        %128 = sbr.rel (%p125) target = $region12
      $region11: #{tpu_custom_call.1} parent=5 // pred_region
        %s129 = ssub.s32 %s14, 1
      $region12: #{tpu_custom_call.1} parent=5 // pred_fallthru
        _
      %p130 = scmp.lt.s32.totalorder %s14, 4
      // Predicated region
      $region13: #{tpu_custom_call.1} parent=5 // pred_check
        %p131 = pneg %p130
      $region14: #{tpu_custom_call.1} parent=5 // pred_check_branch
        %133 = sbr.rel (%p131) target = $region16
      $region15: #{tpu_custom_call.1} parent=5 // pred_region
        // Predicated region
        $region17: #{tpu_custom_call.1} parent=15 // pred_check
          %p134 = pneg %p55
        $region18: #{tpu_custom_call.1} parent=15 // pred_check_branch
          %136 = sbr.rel (%p134) target = $region20
        $region19: #{tpu_custom_call.1} parent=15 // pred_region
          %s137 = sand.u32 %s45, 1
          %s138 = scalar_lea.sflag [#allocation6], %s137
          %s139 = sand.u32 %s45, 1
          %s140 = smul.addr %s139, 64
          %s141 = scalar_lea.vmem [#allocation5], %s140
          %s142 = smul.u32 2, %s23
          %144 = vsyncadd %s138, 0
          %s145 = smul.addr %s21, 8
          %s146 = sadd.s32 %s142, %s145
          %s147 = smul.addr %s146, 8
          %s148 = scalar_lea.hbm %s0, %s147
          %s149 = sshll.u32 %s148, 4
          %s150 = int_to_ptr.hbm [resolvable:$true] %s149
          %s151 = sshll.u32 %s141, 4
          %s152 = int_to_ptr.vmem [resolvable:$true] %s151
          %157 = dma.hbm_to_vmem [thread:$0]  %s150, 1024, %s152, %s138, 256, 256, 16
        $region20: #{tpu_custom_call.1} parent=15 // pred_fallthru
          _
        // Predicated region
        $region21: #{tpu_custom_call.1} parent=15 // pred_check
          %p158 = pneg %p83
        $region22: #{tpu_custom_call.1} parent=15 // pred_check_branch
          %160 = sbr.rel (%p158) target = $region24
        $region23: #{tpu_custom_call.1} parent=15 // pred_region
          %s161 = sand.u32 %s73, 1
          %s162 = scalar_lea.sflag [#allocation8], %s161
          %s163 = sand.u32 %s73, 1
          %s164 = smul.addr %s163, 2
          %s165 = scalar_lea.vmem [#allocation7], %s164
          %s166 = smul.u32 2, %s23
          %168 = vsyncadd %s162, 0
          %s169 = smul.addr %s21, 2
          %s170 = sadd.s32 %s166, %s169
          %s171 = scalar_lea.hbm %s1, %s170
          %s173 = sshll.u32 %s171, 4
          %s174 = int_to_ptr.hbm [resolvable:$true] %s173
          %s175 = sshll.u32 %s165, 4
          %s176 = int_to_ptr.vmem [resolvable:$true] %s175
          %178 = dma.hbm_to_vmem [thread:$0]  %s174, 32, %s176, %s162
        $region24: #{tpu_custom_call.1} parent=15 // pred_fallthru
          _
      $region16: #{tpu_custom_call.1} parent=5 // pred_fallthru
        _
      %p179 = scmp.le.s32.totalorder 1, %s14
      %p180 = scmp.lt.s32.totalorder %s14, 5
      %p181 = pnand %p179, %p180
      %p182 = pneg %p181
      // Predicated region
      $region25: #{tpu_custom_call.1} parent=5 // pred_check
        _
      $region26: #{tpu_custom_call.1} parent=5 // pred_check_branch
        %184 = sbr.rel (%p181) target = $region28
      $region27: #{tpu_custom_call.1} parent=5 // pred_region
        %s185 = ssub.s32 %s14, 1
        %s186 = sand.u32 %s48, 1
        %s187 = scalar_lea.sflag [#allocation6], %s186
        %s188 = sand.u32 %s48, 1
        %s189 = smul.addr %s188, 64
        %s190 = scalar_lea.vmem [#allocation5], %s189
        // Predicated region
        $region29: #{tpu_custom_call.1} parent=27 // pred_check
          %p191 = pneg %p61
        $region30: #{tpu_custom_call.1} parent=27 // pred_check_branch
          %193 = sbr.rel (%p191) target = $region32
        $region31: #{tpu_custom_call.1} parent=27 // pred_region
          %195 = dma.done %s187, 1024
        $region32: #{tpu_custom_call.1} parent=27 // pred_fallthru
          _
        %s196 = sand.u32 %s76, 1
        %s197 = scalar_lea.sflag [#allocation8], %s196
        %s198 = sand.u32 %s76, 1
        %s199 = smul.addr %s198, 2
        %s200 = scalar_lea.vmem [#allocation7], %s199
        // Predicated region
        $region33: #{tpu_custom_call.1} parent=27 // pred_check
          %p201 = pneg %p89
        $region34: #{tpu_custom_call.1} parent=27 // pred_check_branch
          %203 = sbr.rel (%p201) target = $region36
        $region35: #{tpu_custom_call.1} parent=27 // pred_region
          %205 = dma.done %s197, 32
        $region36: #{tpu_custom_call.1} parent=27 // pred_fallthru
          _
        %s206 = sand.u32 %s48, 1
        %s207 = scalar_lea.sflag [#allocation6], %s206
        %s208 = sand.u32 %s48, 1
        %s209 = smul.addr %s208, 64
        %s210 = scalar_lea.vmem [#allocation5], %s209
        %p211 = pneg %p61
        %p212 = pneg %p58
        %s213 = sand.u32 %s76, 1
        %s214 = scalar_lea.sflag [#allocation8], %s213
        %s215 = sand.u32 %s76, 1
        %s216 = smul.addr %s215, 2
        %s217 = scalar_lea.vmem [#allocation7], %s216
        %p218 = pneg %p89
        %p219 = pneg %p86
        %p220 = pneg %p115
        %p221 = pneg %p112
        %p222 = scmp.lt.s32.totalorder %s24, 1
        %s223 = scalar_select %p222, %s24, 1
        %s224 = scalar_lea.vmem %s2, %s223
        %s225 = smul.u32 2, %s26
        %s226 = smul.u32 2, %s26
        %p227 = scmp.lt.s32.totalorder %s24, 1
        %s228 = scalar_select %p227, %s24, 1
        %s229 = scalar_lea.vmem %s2, %s228
        %v230 = vld [vmem:[%s190] sm:$0xff]
        %v231 = vld [vmem:[%s190 + $0x8] sm:$0xff]
        %v232 = vld [vmem:[%s190 + $0x10] sm:$0xff]
        %v233 = vld [vmem:[%s190 + $0x18] sm:$0xff]
        %v234 = vld [vmem:[%s190 + $0x20] sm:$0xff]
        %v235 = vld [vmem:[%s190 + $0x28] sm:$0xff]
        %v236 = vld [vmem:[%s190 + $0x30] sm:$0xff]
        %v237 = vld [vmem:[%s190 + $0x38] sm:$0xff]
        %v238 = vld [vmem:[%s200] sm:$0x3]
        %v239 = vlaneseq
        %v240 = vshrl.u32 %v239, 7
        %vm241 = vcmp.ge.s32.totalorder %v240, 0
        %v242 = vsel %vm241, 1, 0
        %v243 = vadd.s32 %v240, %v242
        %v244 = vperm.slane %v238, 0
        %v245 = vperm.slane %v238, 1
        %vm246 = vcmp.eq.s32.totalorder %v244, %v243
        %vm247 = vcmp.eq.s32.totalorder %v245, %v243
        %v248 = vsel %vm246, 1, 0
        %v249 = vsel %vm247, 1, 0
        %v250 = vcvt.s32.f32 %v248
        %v251 = vcvt.s32.f32 %v249
        %p252 = scmp.eq.s32.totalorder %s25, 0
        %p253 = scmp.eq.s32.totalorder %s26, 0
        %p254 = pnand %p252, %p253
        %p255 = pneg %p254
        // Predicated region
        $region37: #{tpu_custom_call.1} parent=27 // pred_check
          _
        $region38: #{tpu_custom_call.1} parent=27 // pred_check_branch
          %257 = sbr.rel (%p254) target = $region40
        $region39: #{tpu_custom_call.1} parent=27 // pred_region
          %vm258 = vcmask 256000
          %259 = vst.msk [vmem:[#allocation2] sm:$0x7] %vm258, 0.0
          %vm260 = vcmask 2048
          %261 = vst.msk [vmem:[#allocation3] sm:$0x7] %vm260, 0.0
          %262 = vst.msk [vmem:[#allocation4] sm:$0x7] %vm260, 0.0
        $region40: #{tpu_custom_call.1} parent=27 // pred_fallthru
          _
        // Predicated region
        $region41: #{tpu_custom_call.1} parent=27 // pred_check
          %p263 = pneg %p252
        $region42: #{tpu_custom_call.1} parent=27 // pred_check_branch
          %265 = sbr.rel (%p263) target = $region44
        $region43: #{tpu_custom_call.1} parent=27 // pred_region
          %v266 = vld [vmem:[#allocation2] sm:$0x7]
          %267 = vmatpush.xpose.msra.mxu0 0.0
          %268 = vmatpush.xpose.msra.mxu0 0.0
          %269 = vmatpush.xpose.msra.mxu0 0.0
          %270 = vmatpush.xpose.msra.mxu0 0.0
          %271 = vmatpush.xpose.msra.mxu0 0.0
          %272 = vmatpush.xpose.msra.mxu0 0.0
          %273 = vmatpush.xpose.msra.mxu0 0.0
          %274 = vmatpush.xpose.msra.mxu0 0.0
          %275 = vmatpush.xpose.msra.mxu0 0.0
          %276 = vmatpush.xpose.msra.mxu0 0.0
          %277 = vmatpush.xpose.msra.mxu0 0.0
          %278 = vmatpush.xpose.msra.mxu0 0.0
          %279 = vmatpush.xpose.msra.mxu0 %v236
          %280 = vmatpush.xpose.msra.mxu0 %v234
          %281 = vmatpush.xpose.msra.mxu0 %v232
          %282 = vmatpush.xpose.msra.mxu0 %v230
          %283 = vmatmul.f32.gmra.mxu0 %v250
          %v284 = vpop.f32.mrf.mxu0
          %v285 = vadd.f32 0.0, %v284
          %286 = vdwg.mxu0
          %287 = vmatpush.xpose.msra.mxu0 0.0
          %288 = vmatpush.xpose.msra.mxu0 0.0
          %289 = vmatpush.xpose.msra.mxu0 0.0
          %290 = vmatpush.xpose.msra.mxu0 0.0
          %291 = vmatpush.xpose.msra.mxu0 0.0
          %292 = vmatpush.xpose.msra.mxu0 0.0
          %293 = vmatpush.xpose.msra.mxu0 0.0
          %294 = vmatpush.xpose.msra.mxu0 0.0
          %295 = vmatpush.xpose.msra.mxu0 0.0
          %296 = vmatpush.xpose.msra.mxu0 0.0
          %297 = vmatpush.xpose.msra.mxu0 0.0
          %298 = vmatpush.xpose.msra.mxu0 0.0
          %299 = vmatpush.xpose.msra.mxu0 %v237
          %300 = vmatpush.xpose.msra.mxu0 %v235
          %301 = vmatpush.xpose.msra.mxu0 %v233
          %302 = vmatpush.xpose.msra.mxu0 %v231
          %303 = vmatmul.f32.gmra.mxu0 %v251
          %v304 = vpop.f32.mrf.mxu0
          %v305 = vadd.f32 %v285, %v304
          %306 = vdwg.mxu0
          %v307 = vadd.f32 %v266, %v305
          %vm308 = vcmask 256000
          %309 = vst.msk [vmem:[#allocation2] sm:$0x7] %vm308, %v307
          %v310 = vld [vmem:[#allocation3] sm:$0x7]
          %vm311 = vcmask 1042432
          %v312 = vsel %vm311, %v250, 0.0
          %v313 = vsel %vm311, %v251, 0.0
          %v314 = vadd.f32 %v312, %v313
          %315 = vadd.xlane.f32.xlu0 %v314
          %v316 = vpop.xlane.xlu0 %315
          %v317 = vadd.f32 %v310, %v316
          %vm318 = vcmask 2048
          %319 = vst.msk [vmem:[#allocation3] sm:$0x7] %vm318, %v317
        $region44: #{tpu_custom_call.1} parent=27 // pred_fallthru
          _
        %p320 = scmp.eq.s32.totalorder %s25, 1
        // Predicated region
        $region45: #{tpu_custom_call.1} parent=27 // pred_check
          %p321 = pneg %p320
        $region46: #{tpu_custom_call.1} parent=27 // pred_check_branch
          %323 = sbr.rel (%p321) target = $region48
        $region47: #{tpu_custom_call.1} parent=27 // pred_region
          %v324 = vld [vmem:[#allocation3] sm:$0x7]
          %v325 = vmax.f32 %v324, 1.0
          %v326 = vrcp.pop %v325
          %v327 = vmul.f32 %v325, %v326
          %v328 = vsub.f32 1.0, %v327
          %v329 = vmul.f32 %v326, %v328
          %v330 = vadd.f32 %v326, %v329
          %vm331 = vweird.f32 %v325
          %vm332 = vweird.f32 %v326
          %vm333 = vmor %vm331, %vm332
          %v334 = vsel %vm333, %v326, %v330
          %v335 = vand.u32 2147483647, %v325
          %vm336 = vcmp.eq.f32.partialorder %v335, 8.507059e+37
          %v337 = vand.u32 %v325, 2147483648
          %v338 = vor.u32 1.1754944e-38, %v337
          %v339 = vsel %vm336, %v338, %v334
          %v340 = vmul.f32 1.0, %v339
          %v341 = vld [vmem:[#allocation2] sm:$0x7]
          %343 = vset.pattern.permute.xlu0 0
          %344 = vperm.xlu0 %343, %v340
          %v345 = vpop.permute.xlu0 %344
          %v347 = vmul.f32 %v341, %v345
          %v348 = vmul.f32 %v347, %v347
          %vm349 = vcmask 256000
          %v350 = vsel %vm349, %v348, 0.0
          %351 = vadd.xlane.f32.xlu0 %v350
          %v352 = vpop.xlane.xlu0 %351
          %v353 = vmul.f32 %v230, %v230
          %v354 = vmul.f32 %v231, %v231
          %v355 = vmul.f32 %v232, %v232
          %v356 = vmul.f32 %v233, %v233
          %v357 = vmul.f32 %v234, %v234
          %v358 = vmul.f32 %v235, %v235
          %v359 = vmul.f32 %v236, %v236
          %v360 = vmul.f32 %v237, %v237
          %v361 = vadd.f32 %v353, %v355
          %v362 = vadd.f32 %v361, %v357
          %v363 = vadd.f32 %v362, %v359
          %v364 = vrot.slane %v363, 4
          %v365 = vadd.f32 %v363, %v364
          %v366 = vrot.slane %v365, 2
          %v367 = vadd.f32 %v365, %v366
          %v368 = vrot.slane %v367, 1
          %v369 = vadd.f32 %v367, %v368
          %v370 = vadd.f32 %v354, %v356
          %v371 = vadd.f32 %v370, %v358
          %v372 = vadd.f32 %v371, %v360
          %v373 = vrot.slane %v372, 4
          %v374 = vadd.f32 %v372, %v373
          %v375 = vrot.slane %v374, 2
          %v376 = vadd.f32 %v374, %v375
          %v377 = vrot.slane %v376, 1
          %v378 = vadd.f32 %v376, %v377
          %vm379 = vcmask 261120
          %v381 = vsel %vm379, %v347, 0
          %383 = vmatpush.msra.mxu0 0.0
          %384 = vmatpush.msra.mxu0 0.0
          %385 = vmatpush.msra.mxu0 0.0
          %386 = vmatpush.msra.mxu0 0.0
          %387 = vmatpush.msra.mxu0 0.0
          %388 = vmatpush.msra.mxu0 0.0
          %389 = vmatpush.msra.mxu0 0.0
          %390 = vmatpush.msra.mxu0 0.0
          %391 = vmatpush.msra.mxu0 0.0
          %392 = vmatpush.msra.mxu0 0.0
          %393 = vmatpush.msra.mxu0 0.0
          %394 = vmatpush.msra.mxu0 0.0
          %395 = vmatpush.msra.mxu0 %v236
          %396 = vmatpush.msra.mxu0 %v234
          %397 = vmatpush.msra.mxu0 %v232
          %398 = vmatpush.msra.mxu0 %v230
          %399 = vmatmul.f32.gmra.mxu0 %v381
          %v400 = vpop.f32.mrf.mxu0
          %v401 = vadd.f32 0.0, %v400
          %402 = vdwg.mxu0
          %403 = vmatpush.msra.mxu0 0.0
          %404 = vmatpush.msra.mxu0 0.0
          %405 = vmatpush.msra.mxu0 0.0
          %406 = vmatpush.msra.mxu0 0.0
          %407 = vmatpush.msra.mxu0 0.0
          %408 = vmatpush.msra.mxu0 0.0
          %409 = vmatpush.msra.mxu0 0.0
          %410 = vmatpush.msra.mxu0 0.0
          %411 = vmatpush.msra.mxu0 0.0
          %412 = vmatpush.msra.mxu0 0.0
          %413 = vmatpush.msra.mxu0 0.0
          %414 = vmatpush.msra.mxu0 0.0
          %415 = vmatpush.msra.mxu0 %v237
          %416 = vmatpush.msra.mxu0 %v235
          %417 = vmatpush.msra.mxu0 %v233
          %418 = vmatpush.msra.mxu0 %v231
          %419 = vmatmul.f32.gmra.mxu0 %v381
          %v420 = vpop.f32.mrf.mxu0
          %v421 = vadd.f32 0.0, %v420
          %422 = vdwg.mxu0
          %v423 = vadd.f32 %v352, %v369
          %v424 = vadd.f32 %v352, %v378
          %v425 = vmul.f32 %v401, 2.0
          %v426 = vmul.f32 %v421, 2.0
          %v427 = vsub.f32 %v423, %v425
          %v428 = vsub.f32 %v424, %v426
          %v429 = vmax.f32 %v427, 0.0
          %v430 = vmax.f32 %v428, 0.0
          %v431 = vrsqrt.pop %v429
          %v432 = vmul.f32 %v431, %v429
          %v433 = vmul.f32 %v432, %v431
          %v434 = vmul.f32 0.5, %v433
          %v435 = vsub.f32 1.5, %v434
          %v436 = vmul.f32 %v431, %v435
          %v437 = vmul.f32 %v429, %v436
          %vm438 = vcmp.eq.f32.partialorder %v429, inf
          %v439 = vsel %vm438, %v429, %v437
          %vm440 = vcmp.eq.f32.partialorder %v429, 0.0
          %v441 = vand.u32 %v429, 2147483648
          %v442 = vsel %vm440, %v441, %v439
          %v443 = vrsqrt.pop %v430
          %v444 = vmul.f32 %v443, %v430
          %v445 = vmul.f32 %v444, %v443
          %v446 = vmul.f32 0.5, %v445
          %v447 = vsub.f32 1.5, %v446
          %v448 = vmul.f32 %v443, %v447
          %v449 = vmul.f32 %v430, %v448
          %vm450 = vcmp.eq.f32.partialorder %v430, inf
          %v451 = vsel %vm450, %v430, %v449
          %vm452 = vcmp.eq.f32.partialorder %v430, 0.0
          %v453 = vand.u32 %v430, 2147483648
          %v454 = vsel %vm452, %v453, %v451
          %v455 = vsub.f32 %v442, 0.5
          %v456 = vsub.f32 %v454, 0.5
          %v457 = vmax.f32 %v455, 0.0
          %v458 = vmax.f32 %v456, 0.0
          %v459 = vld [vmem:[#allocation4] sm:$0x7]
          %v460 = vmul.f32 %v457, %v457
          %v461 = vmul.f32 %v458, %v458
          %v462 = vmul.f32 %v460, %v250
          %v463 = vmul.f32 %v461, %v251
          %vm464 = vcmask 1042432
          %v465 = vsel %vm464, %v462, 0.0
          %v466 = vsel %vm464, %v463, 0.0
          %v467 = vadd.f32 %v465, %v466
          %468 = vadd.xlane.f32.xlu0 %v467
          %v469 = vpop.xlane.xlu0 %468
          %v470 = vadd.f32 %v459, %v469
          %vm471 = vcmask 2048
          %472 = vst.msk [vmem:[#allocation4] sm:$0x7] %vm471, %v470
        $region48: #{tpu_custom_call.1} parent=27 // pred_fallthru
          _
        %p473 = pnand %p320, %p253
        %p474 = pneg %p473
        // Predicated region
        $region49: #{tpu_custom_call.1} parent=27 // pred_check
          _
        $region50: #{tpu_custom_call.1} parent=27 // pred_check_branch
          %476 = sbr.rel (%p473) target = $region52
        $region51: #{tpu_custom_call.1} parent=27 // pred_region
          %v477 = vld [vmem:[#allocation3] sm:$0x7]
          %v478 = vmax.f32 %v477, 1.0
          %v479 = vrcp.pop %v478
          %v480 = vmul.f32 %v478, %v479
          %v481 = vsub.f32 1.0, %v480
          %v482 = vmul.f32 %v479, %v481
          %v483 = vadd.f32 %v479, %v482
          %vm484 = vweird.f32 %v478
          %vm485 = vweird.f32 %v479
          %vm486 = vmor %vm484, %vm485
          %v487 = vsel %vm486, %v479, %v483
          %v488 = vand.u32 2147483647, %v478
          %vm489 = vcmp.eq.f32.partialorder %v488, 8.507059e+37
          %v490 = vand.u32 %v478, 2147483648
          %v491 = vor.u32 1.1754944e-38, %v490
          %v492 = vsel %vm489, %v491, %v487
          %v493 = vmul.f32 1.0, %v492
          %v494 = vld [vmem:[#allocation2] sm:$0x7]
          %496 = vset.pattern.permute.xlu0 0
          %497 = vperm.xlu0 %496, %v493
          %v498 = vpop.permute.xlu0 %497
          %v500 = vmul.f32 %v494, %v498
          %v501 = vmul.f32 %v500, %v500
          %vm502 = vcmask 256000
          %v503 = vsel %vm502, %v501, 0.0
          %504 = vadd.xlane.f32.xlu0 %v503
          %v505 = vpop.xlane.xlu0 %504
          %v506 = vld [vmem:[#allocation4] sm:$0x7]
          %v507 = vmul.f32 %v506, %v493
          %vm508 = vcmask 2048
          %v509 = vsel %vm508, %v507, 0.0
          %510 = vadd.xlane.f32.xlu0 %v509
          %v511 = vpop.xlane.xlu0 %510
          %v512 = vrot.slane %v511, 4
          %v513 = vadd.f32 %v511, %v512
          %v514 = vrot.slane %v513, 2
          %v515 = vadd.f32 %v513, %v514
          %v516 = vrot.slane %v515, 1
          %v517 = vadd.f32 %v515, %v516
          %s518 = vtos %v517
          %v519 = vstv %s518
          %v520 = vmul.f32 %v519, 0.33333334
          %v521 = vrsqrt.pop %v505
          %v522 = vmul.f32 %v521, %v505
          %v523 = vmul.f32 %v522, %v521
          %v524 = vmul.f32 0.5, %v523
          %v525 = vsub.f32 1.5, %v524
          %v526 = vmul.f32 %v521, %v525
          %v527 = vmul.f32 %v505, %v526
          %vm528 = vcmp.eq.f32.partialorder %v505, inf
          %v529 = vsel %vm528, %v505, %v527
          %vm530 = vcmp.eq.f32.partialorder %v505, 0.0
          %v531 = vand.u32 %v505, 2147483648
          %v532 = vsel %vm530, %v531, %v529
          %v533 = vsel %vm508, %v532, 0.0
          %534 = vadd.xlane.f32.xlu0 %v533
          %v535 = vpop.xlane.xlu0 %534
          %v536 = vrot.slane %v535, 4
          %v537 = vadd.f32 %v535, %v536
          %v538 = vrot.slane %v537, 2
          %v539 = vadd.f32 %v537, %v538
          %v540 = vrot.slane %v539, 1
          %v541 = vadd.f32 %v539, %v540
          %s542 = vtos %v541
          %v543 = vstv %s542
          %v544 = vmul.f32 %v543, 0.33333334
          %vm545 = vcmask 261120
          %v547 = vsel %vm545, 1.0, 0
          %v550 = vsel %vm545, %v501, 0
          %552 = vmatpush.xpose.msra.mxu0 0.0
          %553 = vmatpush.xpose.msra.mxu0 0.0
          %554 = vmatpush.xpose.msra.mxu0 0.0
          %555 = vmatpush.xpose.msra.mxu0 0.0
          %556 = vmatpush.xpose.msra.mxu0 0.0
          %557 = vmatpush.xpose.msra.mxu0 0.0
          %558 = vmatpush.xpose.msra.mxu0 0.0
          %559 = vmatpush.xpose.msra.mxu0 0.0
          %560 = vmatpush.xpose.msra.mxu0 0.0
          %561 = vmatpush.xpose.msra.mxu0 0.0
          %562 = vmatpush.xpose.msra.mxu0 0.0
          %563 = vmatpush.xpose.msra.mxu0 0.0
          %564 = vmatpush.xpose.msra.mxu0 0.0
          %565 = vmatpush.xpose.msra.mxu0 0.0
          %566 = vmatpush.xpose.msra.mxu0 0.0
          %567 = vmatpush.xpose.msra.mxu0 %v550
          %568 = vmatmul.f32.gmra.mxu0 %v547
          %v569 = vpop.f32.mrf.mxu0
          %v570 = vadd.f32 0.0, %v569
          %571 = vdwg.mxu0
          %v573 = vsel %vm545, %v500, 0
          %575 = vmatpush.xpose.msra.mxu0 0.0
          %576 = vmatpush.xpose.msra.mxu0 0.0
          %577 = vmatpush.xpose.msra.mxu0 0.0
          %578 = vmatpush.xpose.msra.mxu0 0.0
          %579 = vmatpush.xpose.msra.mxu0 0.0
          %580 = vmatpush.xpose.msra.mxu0 0.0
          %581 = vmatpush.xpose.msra.mxu0 0.0
          %582 = vmatpush.xpose.msra.mxu0 0.0
          %583 = vmatpush.xpose.msra.mxu0 0.0
          %584 = vmatpush.xpose.msra.mxu0 0.0
          %585 = vmatpush.xpose.msra.mxu0 0.0
          %586 = vmatpush.xpose.msra.mxu0 0.0
          %587 = vmatpush.xpose.msra.mxu0 0.0
          %588 = vmatpush.xpose.msra.mxu0 0.0
          %589 = vmatpush.xpose.msra.mxu0 0.0
          %590 = vmatpush.xpose.msra.mxu0 %v573
          %591 = vmatmul.f32.gmra.mxu0 %v573
          %v592 = vpop.f32.mrf.mxu0
          %v593 = vadd.f32 0.0, %v592
          %594 = vdwg.mxu0
          %v595 = vperm.slane %v570, 0
          %v596 = vadd.f32 %v505, %v595
          %v597 = vmul.f32 %v593, 2.0
          %v598 = vsub.f32 %v596, %v597
          %v599 = vmax.f32 %v598, 0.0
          %v600 = vrsqrt.pop %v599
          %v601 = vmul.f32 %v600, %v599
          %v602 = vmul.f32 %v601, %v600
          %v603 = vmul.f32 0.5, %v602
          %v604 = vsub.f32 1.5, %v603
          %v605 = vmul.f32 %v600, %v604
          %v606 = vmul.f32 %v599, %v605
          %vm607 = vcmp.eq.f32.partialorder %v599, inf
          %v608 = vsel %vm607, %v599, %v606
          %vm609 = vcmp.eq.f32.partialorder %v599, 0.0
          %v610 = vand.u32 %v599, 2147483648
          %v611 = vsel %vm609, %v610, %v608
          %v612 = vlaneseq
          %v613 = vand.u32 %v612, 127
          %vm614 = vcmp.eq.s32.totalorder %v240, %v613
          %v615 = vsel %vm614, 1, 0
          %v616 = vcvt.s32.f32 %v615
          %v617 = vsub.f32 1.0, %v616
          %v618 = vmul.f32 %v617, 3.0
          %v619 = vsub.f32 %v618, %v611
          %v620 = vmax.f32 %v619, 0.0
          %v621 = vmul.f32 %v620, %v620
          %vm622 = vcmask 18432
          %v623 = vsel %vm622, %v621, 0.0
          %624 = vadd.xlane.f32.xlu0 %v623
          %v625 = vpop.xlane.xlu0 %624
          %v626 = vrot.slane %v625, 4
          %v627 = vadd.f32 %v625, %v626
          %v628 = vrot.slane %v627, 2
          %v629 = vadd.f32 %v627, %v628
          %v630 = vrot.slane %v629, 1
          %v631 = vadd.f32 %v629, %v630
          %s632 = vtos %v631
          %v633 = vstv %s632
          %v634 = vmul.f32 %v633, 0.16666667
          %v635 = vadd.f32 %v520, %v634
          %v636 = vmul.f32 %v544, 0.001
          %v637 = vadd.f32 %v635, %v636
          %vm638 = vcmask 0
          %639 = vst.msk [vmem:[%s229] sm:$0x1] %vm638, %v637
        $region52: #{tpu_custom_call.1} parent=27 // pred_fallthru
          _
        %p640 = scmp.lt.s32.totalorder %s24, 1
        %s641 = scalar_select %p640, %s24, 1
        %s642 = scalar_lea.vmem %s2, %s641
        // Predicated region
        $region53: #{tpu_custom_call.1} parent=27 // pred_check
          %p643 = pneg %p112
        $region54: #{tpu_custom_call.1} parent=27 // pred_check_branch
          %645 = sbr.rel (%p643) target = $region56
        $region55: #{tpu_custom_call.1} parent=27 // pred_region
          _
        $region56: #{tpu_custom_call.1} parent=27 // pred_fallthru
          _
      $region28: #{tpu_custom_call.1} parent=5 // pred_fallthru
        _
      %p646 = scmp.le.s32.totalorder 2, %s14
      // Predicated region
      $region57: #{tpu_custom_call.1} parent=5 // pred_check
        %p647 = pneg %p646
      $region58: #{tpu_custom_call.1} parent=5 // pred_check_branch
        %649 = sbr.rel (%p647) target = $region60
      $region59: #{tpu_custom_call.1} parent=5 // pred_region
        %s650 = ssub.s32 %s14, 2
        // Predicated region
        $region61: #{tpu_custom_call.1} parent=59 // pred_check
          %p651 = pneg %p118
        $region62: #{tpu_custom_call.1} parent=59 // pred_check_branch
          %653 = sbr.rel (%p651) target = $region64
        $region63: #{tpu_custom_call.1} parent=59 // pred_region
          %p654 = scmp.lt.s32.totalorder %s27, 1
          %s655 = scalar_select %p654, %s27, 1
          %s656 = scalar_lea.vmem %s2, %s655
        $region64: #{tpu_custom_call.1} parent=59 // pred_fallthru
          _
      $region60: #{tpu_custom_call.1} parent=5 // pred_fallthru
        _
    $region6: #{tpu_custom_call.1} parent=1 // loop_footer
      %s18 = sadd.s32 1, %s14
    $region7: #{tpu_custom_call.1} parent=1 // loop_footer_branch
      %13 = sbr.rel target = $region3
    $region8: #{tpu_custom_call.1} parent=1 // loop_exit
      _
    %657 = vsyncpa [#allocation6], 1
    %s658 = scalar_lea.sflag [#allocation6], 1
    %659 = vsyncpa %s658, 1
    %660 = vsyncpa [#allocation8], 1
    %s661 = scalar_lea.sflag [#allocation8], 1
    %662 = vsyncpa %s661, 1

</llo_original>
